<compile_context>
chip_gen: v5e
topology: v5e:2x2
jax: 0.10.0
libtpu: 0.0.40
codegen_flags: <defaults>
</compile_context>

<pallas_src>
import jax
import jax.numpy as jnp
from jax.experimental import pallas as pl
from jax.experimental.pallas import tpu as pltpu


def _round_up(x, m):
    return (x + m - 1) // m * m


def fc_mnist_kernel(*refs):
    """refs = (x_ref, w0_ref, b0_ref, ..., wL_ref, bL_ref, o_ref).

    h = x; per layer: h = h @ W + b (f32 accumulation on the MXU); ReLU
    between layers (not after the last); result written to o_ref in f32.
    """
    x_ref = refs[0]
    o_ref = refs[-1]
    wb_refs = refs[1:-1]
    n_layers = len(wb_refs) // 2
    compute_dtype = x_ref.dtype            # bf16

    h = x_ref[...]                         # (TILE_B, in_dim) bf16
    for i in range(n_layers):
        w = wb_refs[2 * i][...]            # (in_pad, out_pad) bf16
        b = wb_refs[2 * i + 1][...]        # (1, out_pad) f32, broadcasts over batch
        h = jnp.dot(h, w, preferred_element_type=jnp.float32) + b
        if i < n_layers - 1:
            h = jnp.maximum(h, 0.0).astype(compute_dtype)   # ReLU, back to bf16
    o_ref[...] = h.astype(o_ref.dtype)


def init_fc_mnist_params(key, input_dim=28 * 28, width=50, depth=3,
                         num_classes=10, use_bias=True):
    """Deterministic synthetic parameters, same shapes as the PyTorch module."""
    dims = [input_dim] + [width] * (depth - 1) + [num_classes]
    params = []
    for i in range(len(dims) - 1):
        key, kw, kb = jax.random.split(key, 3)
        bound = 1.0 / jnp.sqrt(jnp.float32(dims[i]))      # PyTorch-Linear-like scale
        w = jax.random.uniform(kw, (dims[i], dims[i + 1]), jnp.float32,
                               minval=-bound, maxval=bound)
        if use_bias:
            b = jax.random.uniform(kb, (dims[i + 1],), jnp.float32,
                                   minval=-bound, maxval=bound)
        else:
            b = jnp.zeros((dims[i + 1],), jnp.float32)
        params.append((w, b))
    return params


def prepare_fc_mnist_params(params, compute_dtype=jnp.bfloat16):
    """One-time parameter prep: pad output lanes to 128, cast weights to bf16.

    Layer-0 weight rows stay at input_dim (matches the unpadded x feature dim);
    deeper layers' rows are padded to the previous layer's padded lane count.
    Biases stay f32 (added after the f32-accumulated matmul).
    """
    dims = [params[0][0].shape[0]] + [w.shape[1] for (w, _) in params]
    weights, biases = [], []
    prev_cols = dims[0]                               # rows of next weight
    for (w, b) in params:
        rows = prev_cols
        cols = _round_up(w.shape[1], 128)
        wp = jnp.zeros((rows, cols), compute_dtype)
        wp = wp.at[:w.shape[0], :w.shape[1]].set(w.astype(compute_dtype))
        bp = jnp.zeros((1, cols), jnp.float32)
        bp = bp.at[0, :b.shape[0]].set(b)
        weights.append(wp)
        biases.append(bp)
        prev_cols = cols
    return weights, biases, dims


def fc_mnist_forward(x, prepared, max_tile_b=512):
    """x: (B, C, H, W) float32 NCHW. Returns (B, num_classes) float32 logits."""
    weights, biases, dims = prepared
    compute_dtype = weights[0].dtype

    B = x.shape[0]
    x2 = x.reshape(B, -1).astype(compute_dtype)       # x.view(x.size(0), input_dim)
    in_dim = x2.shape[1]
    assert in_dim == dims[0], (in_dim, dims[0])

    # Batch tiling: biggest tile up to max_tile_b; pad batch only (cheap).
    tile_b = min(max_tile_b, _round_up(B, 8))
    b_pad = _round_up(B, tile_b)
    if b_pad != B:
        x2 = jnp.pad(x2, ((0, b_pad - B), (0, 0)))

    out_cols = weights[-1].shape[1]                   # padded num_classes lanes

    args = [x2]
    in_specs = [pl.BlockSpec((tile_b, in_dim), lambda i: (i, 0))]
    for w, b in zip(weights, biases):
        args += [w, b]
        in_specs += [
            pl.BlockSpec(w.shape, lambda i: (0, 0)),   # VMEM-resident across grid
            pl.BlockSpec(b.shape, lambda i: (0, 0)),
        ]

    out_padded = pl.pallas_call(
        fc_mnist_kernel,
        out_shape=jax.ShapeDtypeStruct((b_pad, out_cols), jnp.float32),
        grid=(b_pad // tile_b,),
        in_specs=in_specs,
        out_specs=pl.BlockSpec((tile_b, out_cols), lambda i: (i, 0)),
        compiler_params=pltpu.CompilerParams(
            dimension_semantics=("parallel",)),        # shard batch over TCs (v7x)
    )(*args)

    return out_padded[:B, :dims[-1]]


def _reference_forward(x, params, compute_dtype=jnp.bfloat16):
    """Plain-JAX reference mirroring the kernel's bf16-input / f32-accum math."""
    h = x.reshape(x.shape[0], -1).astype(compute_dtype)
    n = len(params)
    for i, (w, b) in enumerate(params):
        h = jnp.dot(h, w.astype(compute_dtype),
                    preferred_element_type=jnp.float32) + b
        if i < n - 1:
            h = jnp.maximum(h, 0.0).astype(compute_dtype)
    return h


if __name__ == "__main__":
    key = jax.random.PRNGKey(0)
    k_x, k_p = jax.random.split(key)

    # Small MNIST-like input: batch=2, NCHW (2, 1, 28, 28) -> input_dim = 784.
    x = jax.random.normal(k_x, (2, 1, 28, 28), jnp.float32)

    params = init_fc_mnist_params(
        k_p, input_dim=28 * 28, width=50, depth=3, num_classes=10, use_bias=True)

    # One-time prep (padding + bf16 cast) lives outside the per-call path.
    prepared = prepare_fc_mnist_params(params)

    out = fc_mnist_forward(x, prepared)
    out = jax.block_until_ready(out)

    ref = _reference_forward(x, params)
    assert out.shape == (2, 10), out.shape
    max_err = float(jnp.max(jnp.abs(out - ref)))
    assert jnp.allclose(out, ref, atol=5e-3, rtol=5e-3), max_err

    print("KERNEL_OK")
</pallas_src>

<mosaic_0001>
module attributes {stable_mosaic.version = 11 : i64} {
  func.func @fc_mnist_kernel(%arg0: i32, %arg1: memref<8x784xbf16, #tpu.memory_space<vmem>>, %arg2: memref<784x128xbf16, #tpu.memory_space<vmem>>, %arg3: memref<1x128xf32, #tpu.memory_space<vmem>>, %arg4: memref<128x128xbf16, #tpu.memory_space<vmem>>, %arg5: memref<1x128xf32, #tpu.memory_space<vmem>>, %arg6: memref<128x128xbf16, #tpu.memory_space<vmem>>, %arg7: memref<1x128xf32, #tpu.memory_space<vmem>>, %arg8: memref<8x128xf32, #tpu.memory_space<vmem>>) attributes {dimension_semantics = [#tpu.dimension_semantics<parallel>], iteration_bounds = array<i64: 1>, scalar_prefetch = 0 : i64, scratch_operands = 0 : i64, tpu.core_type = #tpu.core_type<tc>, window_params = [{transform_indices = @transform_0, window_bounds = array<i64: 8, 784>}, {pipeline_mode = #tpu.pipeline_mode<synchronous>, transform_indices = @transform_1, window_bounds = array<i64: 784, 128>}, {pipeline_mode = #tpu.pipeline_mode<synchronous>, transform_indices = @transform_2, window_bounds = array<i64: 1, 128>}, {pipeline_mode = #tpu.pipeline_mode<synchronous>, transform_indices = @transform_3, window_bounds = array<i64: 128, 128>}, {pipeline_mode = #tpu.pipeline_mode<synchronous>, transform_indices = @transform_4, window_bounds = array<i64: 1, 128>}, {pipeline_mode = #tpu.pipeline_mode<synchronous>, transform_indices = @transform_5, window_bounds = array<i64: 128, 128>}, {pipeline_mode = #tpu.pipeline_mode<synchronous>, transform_indices = @transform_6, window_bounds = array<i64: 1, 128>}, {transform_indices = @transform_7, window_bounds = array<i64: 8, 128>}]} {
    %c0 = arith.constant 0 : index
    %c0_0 = arith.constant 0 : index
    %0 = vector.load %arg1[%c0, %c0_0] : memref<8x784xbf16, #tpu.memory_space<vmem>>, vector<8x784xbf16>
    %c0_1 = arith.constant 0 : index
    %c0_2 = arith.constant 0 : index
    %1 = vector.load %arg2[%c0_1, %c0_2] : memref<784x128xbf16, #tpu.memory_space<vmem>>, vector<784x128xbf16>
    %c0_3 = arith.constant 0 : index
    %c0_4 = arith.constant 0 : index
    %2 = vector.load %arg3[%c0_3, %c0_4] : memref<1x128xf32, #tpu.memory_space<vmem>>, vector<1x128xf32>
    %cst = arith.constant dense<0.000000e+00> : vector<8x128xf32>
    %3 = tpu.matmul %0, %1, %cst {dimension_numbers = #tpu.dot_dimension_numbers<[1], [0], [0], [1], [0, 0, 1, 1], [], []>} : vector<8x784xbf16>, vector<784x128xbf16>, vector<8x128xf32> -> vector<8x128xf32>
    %4 = vector.broadcast %2 : vector<1x128xf32> to vector<8x128xf32>
    %5 = arith.addf %3, %4 : vector<8x128xf32>
    %cst_5 = arith.constant 0.000000e+00 : f32
    %6 = vector.broadcast %cst_5 : f32 to vector<8x128xf32>
    %7 = arith.maximumf %5, %6 : vector<8x128xf32>
    %8 = arith.truncf %7 : vector<8x128xf32> to vector<8x128xbf16>
    %c0_6 = arith.constant 0 : index
    %c0_7 = arith.constant 0 : index
    %9 = vector.load %arg4[%c0_6, %c0_7] : memref<128x128xbf16, #tpu.memory_space<vmem>>, vector<128x128xbf16>
    %c0_8 = arith.constant 0 : index
    %c0_9 = arith.constant 0 : index
    %10 = vector.load %arg5[%c0_8, %c0_9] : memref<1x128xf32, #tpu.memory_space<vmem>>, vector<1x128xf32>
    %cst_10 = arith.constant dense<0.000000e+00> : vector<8x128xf32>
    %11 = tpu.matmul %8, %9, %cst_10 {dimension_numbers = #tpu.dot_dimension_numbers<[1], [0], [0], [1], [0, 0, 1, 1], [], []>} : vector<8x128xbf16>, vector<128x128xbf16>, vector<8x128xf32> -> vector<8x128xf32>
    %12 = vector.broadcast %10 : vector<1x128xf32> to vector<8x128xf32>
    %13 = arith.addf %11, %12 : vector<8x128xf32>
    %cst_11 = arith.constant 0.000000e+00 : f32
    %14 = vector.broadcast %cst_11 : f32 to vector<8x128xf32>
    %15 = arith.maximumf %13, %14 : vector<8x128xf32>
    %16 = arith.truncf %15 : vector<8x128xf32> to vector<8x128xbf16>
    %c0_12 = arith.constant 0 : index
    %c0_13 = arith.constant 0 : index
    %17 = vector.load %arg6[%c0_12, %c0_13] : memref<128x128xbf16, #tpu.memory_space<vmem>>, vector<128x128xbf16>
    %c0_14 = arith.constant 0 : index
    %c0_15 = arith.constant 0 : index
    %18 = vector.load %arg7[%c0_14, %c0_15] : memref<1x128xf32, #tpu.memory_space<vmem>>, vector<1x128xf32>
    %cst_16 = arith.constant dense<0.000000e+00> : vector<8x128xf32>
    %19 = tpu.matmul %16, %17, %cst_16 {dimension_numbers = #tpu.dot_dimension_numbers<[1], [0], [0], [1], [0, 0, 1, 1], [], []>} : vector<8x128xbf16>, vector<128x128xbf16>, vector<8x128xf32> -> vector<8x128xf32>
    %20 = vector.broadcast %18 : vector<1x128xf32> to vector<8x128xf32>
    %21 = arith.addf %19, %20 : vector<8x128xf32>
    %c0_17 = arith.constant 0 : index
    %c0_18 = arith.constant 0 : index
    %22 = vector.load %arg8[%c0_17, %c0_18] : memref<8x128xf32, #tpu.memory_space<vmem>>, vector<8x128xf32>
    tpu.vector_store %arg8[%c0_17, %c0_18], %21 {strides = array<i32>} : memref<8x128xf32, #tpu.memory_space<vmem>>, vector<8x128xf32>,
    return
  }
  func.func @transform_0(%arg0: i32) -> (i32, i32) {
    %c0_i32 = arith.constant 0 : i32
    %c0_i32_0 = arith.constant 0 : i32
    return %arg0, %c0_i32 : i32, i32
  }
  func.func @transform_1(%arg0: i32) -> (i32, i32) {
    %c0_i32 = arith.constant 0 : i32
    %c0_i32_0 = arith.constant 0 : i32
    %c0_i32_1 = arith.constant 0 : i32
    return %c0_i32, %c0_i32_0 : i32, i32
  }
  func.func @transform_2(%arg0: i32) -> (i32, i32) {
    %c0_i32 = arith.constant 0 : i32
    %c0_i32_0 = arith.constant 0 : i32
    %c0_i32_1 = arith.constant 0 : i32
    return %c0_i32, %c0_i32_0 : i32, i32
  }
  func.func @transform_3(%arg0: i32) -> (i32, i32) {
    %c0_i32 = arith.constant 0 : i32
    %c0_i32_0 = arith.constant 0 : i32
    %c0_i32_1 = arith.constant 0 : i32
    return %c0_i32, %c0_i32_0 : i32, i32
  }
  func.func @transform_4(%arg0: i32) -> (i32, i32) {
    %c0_i32 = arith.constant 0 : i32
    %c0_i32_0 = arith.constant 0 : i32
    %c0_i32_1 = arith.constant 0 : i32
    return %c0_i32, %c0_i32_0 : i32, i32
  }
  func.func @transform_5(%arg0: i32) -> (i32, i32) {
    %c0_i32 = arith.constant 0 : i32
    %c0_i32_0 = arith.constant 0 : i32
    %c0_i32_1 = arith.constant 0 : i32
    return %c0_i32, %c0_i32_0 : i32, i32
  }
  func.func @transform_6(%arg0: i32) -> (i32, i32) {
    %c0_i32 = arith.constant 0 : i32
    %c0_i32_0 = arith.constant 0 : i32
    %c0_i32_1 = arith.constant 0 : i32
    return %c0_i32, %c0_i32_0 : i32, i32
  }
  func.func @transform_7(%arg0: i32) -> (i32, i32) {
    %c0_i32 = arith.constant 0 : i32
    %c0_i32_0 = arith.constant 0 : i32
    return %arg0, %c0_i32 : i32, i32
  }
}

</mosaic_0001>

<llo_original>
// kernel: tpu_custom_call.1
$region0: #{tpu_custom_call.1}
  #allocation0 [shape = 'u32[]', space=smem, size = 0x4, offset = 0x4, fixed_abs, tag = 'smem constant byte address 0x4 - core index']
  #allocation1 [shape = 'u32[72,128]{1,0:T(1,128)}', space=vmem, size = 0x9000, scoped, tag = 'internal scratch']
  %s0 = inlined_call_operand.hbm [shape: bf16[8,784], index: 0, kind: input, shape index: {}]
  %s1 = inlined_call_operand.hbm [shape: bf16[784,128], index: 1, kind: input, shape index: {}]
  %s2 = inlined_call_operand.vmem [shape: f32[1,128], index: 2, kind: input, shape index: {}]
  %s3 = inlined_call_operand.hbm [shape: bf16[128,128], index: 3, kind: input, shape index: {}]
  %s4 = inlined_call_operand.vmem [shape: f32[1,128], index: 4, kind: input, shape index: {}]
  %s5 = inlined_call_operand.hbm [shape: bf16[128,128], index: 5, kind: input, shape index: {}]
  %s6 = inlined_call_operand.vmem [shape: f32[1,128], index: 6, kind: input, shape index: {}]
  %s7 = inlined_call_operand.hbm [shape: f32[8,128], index: 7, kind: output, shape index: {}]
  %s8 = sld [smem:[#allocation0]]
  $region54: #{tpu_custom_call.1} parent=0
    _
  %s10 = ssub.s32 1, %s8
  %s11 = scalar_select 0, %s10, %s8
  $region1: #{tpu_custom_call.1} parent=0
    #allocation2 [shape = 'u8[14336]{0}', space=vmem, size = 0x3800, scoped, tag = 'input window, operand 0, single buffered']
    #allocation3 [shape = 's32[1]{0}', space=sflag, size = 0x4, scoped, tag = 'scoped memory for tpu_custom_call.1']
    #allocation4 [shape = 's32[1]{0}', space=sflag, size = 0x4, scoped, tag = 'scoped memory for tpu_custom_call.1']
    #allocation5 [shape = 'u8[200704]{0}', space=vmem, size = 0x31000, scoped, tag = 'input window, operand 1, single buffered']
    #allocation6 [shape = 's32[1]{0}', space=sflag, size = 0x4, scoped, tag = 'scoped memory for tpu_custom_call.1']
    #allocation7 [shape = 'u8[32768]{0}', space=vmem, size = 0x8000, scoped, tag = 'input window, operand 3, single buffered']
    #allocation8 [shape = 'u8[32768]{0}', space=vmem, size = 0x8000, scoped, tag = 'input window, operand 5, single buffered']
    #allocation9 [shape = 's32[1]{0}', space=sflag, size = 0x4, scoped, tag = 'scoped memory for tpu_custom_call.1']
    #allocation10 [shape = 'u8[4096]{0}', space=vmem, size = 0x1000, scoped, tag = 'output window, operand 0, single buffered']
    %12 = vsyncpa [#allocation3], 0
    %13 = vsyncpa [#allocation6], 0
    %14 = vsyncpa [#allocation9], 0
    %15 = vsyncpa [#allocation4], 0
    // Predicated region
    $region2: #{tpu_custom_call.1} parent=1 // pred_check
      _
    $region3: #{tpu_custom_call.1} parent=1 // pred_check_branch
      %17 = sbr.rel (0) target = $region5
    $region4: #{tpu_custom_call.1} parent=1 // pred_region
      %19 = vsyncadd [#allocation3], 0
      %s21 = sshll.u32 %s0, 4
      %s22 = int_to_ptr.hbm [resolvable:$true] %s21
      %s23 = sshll.u32 [#allocation2], 4
      %s24 = int_to_ptr.vmem [resolvable:$true] %s23
      %26 = dma.hbm_to_vmem [thread:$0]  %s22, 448, %s24, [#allocation3]
    $region5: #{tpu_custom_call.1} parent=1 // pred_fallthru
      _
    // Predicated region
    $region6: #{tpu_custom_call.1} parent=1 // pred_check
      _
    $region7: #{tpu_custom_call.1} parent=1 // pred_check_branch
      %28 = sbr.rel (0) target = $region9
    $region8: #{tpu_custom_call.1} parent=1 // pred_region
      %30 = vsyncadd [#allocation6], 0
      %s31 = sshll.u32 %s1, 4
      %s32 = int_to_ptr.hbm [resolvable:$true] %s31
      %s33 = sshll.u32 [#allocation5], 4
      %s34 = int_to_ptr.vmem [resolvable:$true] %s33
      %39 = dma.hbm_to_vmem [thread:$0]  %s32, 6272, %s34, [#allocation6], 64, 64, 4
    $region9: #{tpu_custom_call.1} parent=1 // pred_fallthru
      _
    // Predicated region
    $region10: #{tpu_custom_call.1} parent=1 // pred_check
      _
    $region11: #{tpu_custom_call.1} parent=1 // pred_check_branch
      %41 = sbr.rel (0) target = $region13
    $region12: #{tpu_custom_call.1} parent=1 // pred_region
      _
    $region13: #{tpu_custom_call.1} parent=1 // pred_fallthru
      _
    // Predicated region
    $region14: #{tpu_custom_call.1} parent=1 // pred_check
      _
    $region15: #{tpu_custom_call.1} parent=1 // pred_check_branch
      %43 = sbr.rel (0) target = $region17
    $region16: #{tpu_custom_call.1} parent=1 // pred_region
      %45 = vsyncadd [#allocation6], 0
      %s46 = sshll.u32 %s3, 4
      %s47 = int_to_ptr.hbm [resolvable:$true] %s46
      %s48 = sshll.u32 [#allocation7], 4
      %s49 = int_to_ptr.vmem [resolvable:$true] %s48
      %54 = dma.hbm_to_vmem [thread:$0]  %s47, 1024, %s49, [#allocation6], 64, 64, 4
    $region17: #{tpu_custom_call.1} parent=1 // pred_fallthru
      _
    // Predicated region
    $region18: #{tpu_custom_call.1} parent=1 // pred_check
      _
    $region19: #{tpu_custom_call.1} parent=1 // pred_check_branch
      %56 = sbr.rel (0) target = $region21
    $region20: #{tpu_custom_call.1} parent=1 // pred_region
      _
    $region21: #{tpu_custom_call.1} parent=1 // pred_fallthru
      _
    // Predicated region
    $region22: #{tpu_custom_call.1} parent=1 // pred_check
      _
    $region23: #{tpu_custom_call.1} parent=1 // pred_check_branch
      %58 = sbr.rel (0) target = $region25
    $region24: #{tpu_custom_call.1} parent=1 // pred_region
      %60 = vsyncadd [#allocation9], 0
      %s61 = sshll.u32 %s5, 4
      %s62 = int_to_ptr.hbm [resolvable:$true] %s61
      %s63 = sshll.u32 [#allocation8], 4
      %s64 = int_to_ptr.vmem [resolvable:$true] %s63
      %69 = dma.hbm_to_vmem [thread:$0]  %s62, 1024, %s64, [#allocation9], 64, 64, 4
    $region25: #{tpu_custom_call.1} parent=1 // pred_fallthru
      _
    // Predicated region
    $region26: #{tpu_custom_call.1} parent=1 // pred_check
      _
    $region27: #{tpu_custom_call.1} parent=1 // pred_check_branch
      %71 = sbr.rel (0) target = $region29
    $region28: #{tpu_custom_call.1} parent=1 // pred_region
      _
    $region29: #{tpu_custom_call.1} parent=1 // pred_fallthru
      _
    // Predicated region
    $region30: #{tpu_custom_call.1} parent=1 // pred_check
      _
    $region31: #{tpu_custom_call.1} parent=1 // pred_check_branch
      %73 = sbr.rel (0) target = $region33
    $region32: #{tpu_custom_call.1} parent=1 // pred_region
      %75 = dma.done [#allocation3], 448
    $region33: #{tpu_custom_call.1} parent=1 // pred_fallthru
      _
    // Predicated region
    $region34: #{tpu_custom_call.1} parent=1 // pred_check
      _
    $region35: #{tpu_custom_call.1} parent=1 // pred_check_branch
      %77 = sbr.rel (0) target = $region37
    $region36: #{tpu_custom_call.1} parent=1 // pred_region
      %79 = dma.done [#allocation6], 6272
    $region37: #{tpu_custom_call.1} parent=1 // pred_fallthru
      _
    // Predicated region
    $region38: #{tpu_custom_call.1} parent=1 // pred_check
      _
    $region39: #{tpu_custom_call.1} parent=1 // pred_check_branch
      %81 = sbr.rel (0) target = $region41
    $region40: #{tpu_custom_call.1} parent=1 // pred_region
      %83 = dma.done [#allocation6], 1024
    $region41: #{tpu_custom_call.1} parent=1 // pred_fallthru
      _
    // Predicated region
    $region42: #{tpu_custom_call.1} parent=1 // pred_check
      _
    $region43: #{tpu_custom_call.1} parent=1 // pred_check_branch
      %85 = sbr.rel (0) target = $region45
    $region44: #{tpu_custom_call.1} parent=1 // pred_region
      %87 = dma.done [#allocation9], 1024
    $region45: #{tpu_custom_call.1} parent=1 // pred_fallthru
      _
    %v89 = vld [vmem:[#allocation2] sm:$0xff]
    %v90 = vld [vmem:[#allocation2 + $0x8] sm:$0xff]
    %v91 = vld [vmem:[#allocation2 + $0x10] sm:$0xff]
    %v92 = vld [vmem:[#allocation2 + $0x18] sm:$0xf]
    %v93 = vld [vmem:[#allocation5] sm:$0xf]
    %v94 = vld [vmem:[#allocation5 + $0x4] sm:$0xf]
    %v95 = vld [vmem:[#allocation5 + $0x8] sm:$0xf]
    %v96 = vld [vmem:[#allocation5 + $0xc] sm:$0xf]
    %v97 = vld [vmem:[#allocation5 + $0x10] sm:$0xf]
    %v98 = vld [vmem:[#allocation5 + $0x14] sm:$0xf]
    %v99 = vld [vmem:[#allocation5 + $0x18] sm:$0xf]
    %v100 = vld [vmem:[#allocation5 + $0x1c] sm:$0xf]
    %v101 = vld [vmem:[#allocation5 + $0x20] sm:$0xf]
    %v102 = vld [vmem:[#allocation5 + $0x24] sm:$0xf]
    %v103 = vld [vmem:[#allocation5 + $0x28] sm:$0xf]
    %v104 = vld [vmem:[#allocation5 + $0x2c] sm:$0xf]
    %v105 = vld [vmem:[#allocation5 + $0x30] sm:$0xf]
    %v106 = vld [vmem:[#allocation5 + $0x34] sm:$0xf]
    %v107 = vld [vmem:[#allocation5 + $0x38] sm:$0xf]
    %v108 = vld [vmem:[#allocation5 + $0x3c] sm:$0xf]
    %v109 = vld [vmem:[#allocation5 + $0x40] sm:$0xf]
    %v110 = vld [vmem:[#allocation5 + $0x44] sm:$0xf]
    %v111 = vld [vmem:[#allocation5 + $0x48] sm:$0xf]
    %v112 = vld [vmem:[#allocation5 + $0x4c] sm:$0xf]
    %v113 = vld [vmem:[#allocation5 + $0x50] sm:$0xf]
    %v114 = vld [vmem:[#allocation5 + $0x54] sm:$0xf]
    %v115 = vld [vmem:[#allocation5 + $0x58] sm:$0xf]
    %v116 = vld [vmem:[#allocation5 + $0x5c] sm:$0xf]
    %v117 = vld [vmem:[#allocation5 + $0x60] sm:$0xf]
    %v118 = vld [vmem:[#allocation5 + $0x64] sm:$0xf]
    %v119 = vld [vmem:[#allocation5 + $0x68] sm:$0xf]
    %v120 = vld [vmem:[#allocation5 + $0x6c] sm:$0xf]
    %v121 = vld [vmem:[#allocation5 + $0x70] sm:$0xf]
    %v122 = vld [vmem:[#allocation5 + $0x74] sm:$0xf]
    %v123 = vld [vmem:[#allocation5 + $0x78] sm:$0xf]
    %v124 = vld [vmem:[#allocation5 + $0x7c] sm:$0xf]
    %v125 = vld [vmem:[#allocation5 + $0x80] sm:$0xf]
    %v126 = vld [vmem:[#allocation5 + $0x84] sm:$0xf]
    %v127 = vld [vmem:[#allocation5 + $0x88] sm:$0xf]
    %v128 = vld [vmem:[#allocation5 + $0x8c] sm:$0xf]
    %v129 = vld [vmem:[#allocation5 + $0x90] sm:$0xf]
    %v130 = vld [vmem:[#allocation5 + $0x94] sm:$0xf]
    %v131 = vld [vmem:[#allocation5 + $0x98] sm:$0xf]
    %v132 = vld [vmem:[#allocation5 + $0x9c] sm:$0xf]
    %v133 = vld [vmem:[#allocation5 + $0xa0] sm:$0xf]
    %v134 = vld [vmem:[#allocation5 + $0xa4] sm:$0xf]
    %v135 = vld [vmem:[#allocation5 + $0xa8] sm:$0xf]
    %v136 = vld [vmem:[#allocation5 + $0xac] sm:$0xf]
    %v137 = vld [vmem:[#allocation5 + $0xb0] sm:$0xf]
    %v138 = vld [vmem:[#allocation5 + $0xb4] sm:$0xf]
    %v139 = vld [vmem:[#allocation5 + $0xb8] sm:$0xf]
    %v140 = vld [vmem:[#allocation5 + $0xbc] sm:$0xf]
    %v141 = vld [vmem:[#allocation5 + $0xc0] sm:$0xf]
    %v142 = vld [vmem:[#allocation5 + $0xc4] sm:$0xf]
    %v143 = vld [vmem:[#allocation5 + $0xc8] sm:$0xf]
    %v144 = vld [vmem:[#allocation5 + $0xcc] sm:$0xf]
    %v145 = vld [vmem:[#allocation5 + $0xd0] sm:$0xf]
    %v146 = vld [vmem:[#allocation5 + $0xd4] sm:$0xf]
    %v147 = vld [vmem:[#allocation5 + $0xd8] sm:$0xf]
    %v148 = vld [vmem:[#allocation5 + $0xdc] sm:$0xf]
    %v149 = vld [vmem:[#allocation5 + $0xe0] sm:$0xf]
    %v150 = vld [vmem:[#allocation5 + $0xe4] sm:$0xf]
    %v151 = vld [vmem:[#allocation5 + $0xe8] sm:$0xf]
    %v152 = vld [vmem:[#allocation5 + $0xec] sm:$0xf]
    %v153 = vld [vmem:[#allocation5 + $0xf0] sm:$0xf]
    %v154 = vld [vmem:[#allocation5 + $0xf4] sm:$0xf]
    %v155 = vld [vmem:[#allocation5 + $0xf8] sm:$0xf]
    %v156 = vld [vmem:[#allocation5 + $0xfc] sm:$0xf]
    %v157 = vld [vmem:[#allocation5 + $0x100] sm:$0xf]
    %v158 = vld [vmem:[#allocation5 + $0x104] sm:$0xf]
    %v159 = vld [vmem:[#allocation5 + $0x108] sm:$0xf]
    %v160 = vld [vmem:[#allocation5 + $0x10c] sm:$0xf]
    %v161 = vld [vmem:[#allocation5 + $0x110] sm:$0xf]
    %v162 = vld [vmem:[#allocation5 + $0x114] sm:$0xf]
    %v163 = vld [vmem:[#allocation5 + $0x118] sm:$0xf]
    %v164 = vld [vmem:[#allocation5 + $0x11c] sm:$0xf]
    %v165 = vld [vmem:[#allocation5 + $0x120] sm:$0xf]
    %v166 = vld [vmem:[#allocation5 + $0x124] sm:$0xf]
    %v167 = vld [vmem:[#allocation5 + $0x128] sm:$0xf]
    %v168 = vld [vmem:[#allocation5 + $0x12c] sm:$0xf]
    %v169 = vld [vmem:[#allocation5 + $0x130] sm:$0xf]
    %v170 = vld [vmem:[#allocation5 + $0x134] sm:$0xf]
    %v171 = vld [vmem:[#allocation5 + $0x138] sm:$0xf]
    %v172 = vld [vmem:[#allocation5 + $0x13c] sm:$0xf]
    %v173 = vld [vmem:[#allocation5 + $0x140] sm:$0xf]
    %v174 = vld [vmem:[#allocation5 + $0x144] sm:$0xf]
    %v175 = vld [vmem:[#allocation5 + $0x148] sm:$0xf]
    %v176 = vld [vmem:[#allocation5 + $0x14c] sm:$0xf]
    %v177 = vld [vmem:[#allocation5 + $0x150] sm:$0xf]
    %v178 = vld [vmem:[#allocation5 + $0x154] sm:$0xf]
    %v179 = vld [vmem:[#allocation5 + $0x158] sm:$0xf]
    %v180 = vld [vmem:[#allocation5 + $0x15c] sm:$0xf]
    %v181 = vld [vmem:[#allocation5 + $0x160] sm:$0xf]
    %v182 = vld [vmem:[#allocation5 + $0x164] sm:$0xf]
    %v183 = vld [vmem:[#allocation5 + $0x168] sm:$0xf]
    %v184 = vld [vmem:[#allocation5 + $0x16c] sm:$0xf]
    %v185 = vld [vmem:[#allocation5 + $0x170] sm:$0xf]
    %v186 = vld [vmem:[#allocation5 + $0x174] sm:$0xf]
    %v187 = vld [vmem:[#allocation5 + $0x178] sm:$0xf]
    %v188 = vld [vmem:[#allocation5 + $0x17c] sm:$0xf]
    %v189 = vld [vmem:[#allocation5 + $0x180] sm:$0xf]
    %v190 = vld [vmem:[#allocation5 + $0x184] sm:$0xf]
    %v191 = vld [vmem:[%s2] sm:$0x1]
    %v193 = vperm.slane %v191, 0
    %v199 = vunpack.c.l.b16 %v89
    %v200 = vunpack.c.h.b16 %v89
    %v201 = vunpack.c.l.b16 %v90
    %v202 = vunpack.c.h.b16 %v90
    %v203 = vunpack.c.l.b16 %v91
    %v204 = vunpack.c.h.b16 %v91
    %v205 = vunpack.c.l.b16 %v92
    %v206 = vpack.c.b16 %v199, %v199
    %v207 = vpack.c.b16 %v200, %v200
    %v208 = vpack.c.b16 %v201, %v201
    %v209 = vpack.c.b16 %v202, %v202
    %v210 = vpack.c.b16 %v203, %v203
    %v211 = vpack.c.b16 %v204, %v204
    %v212 = vpack.c.b16 %v205, %v205
    %v317 = vunpack.c.l.b16 %v93
    %v318 = vunpack.c.l.b16 %v94
    %v319 = vunpack.c.l.b16 %v95
    %v320 = vunpack.c.l.b16 %v96
    %v321 = vunpack.c.l.b16 %v97
    %v322 = vunpack.c.l.b16 %v98
    %v323 = vunpack.c.l.b16 %v99
    %v324 = vunpack.c.l.b16 %v100
    %v325 = vunpack.c.l.b16 %v101
    %v326 = vunpack.c.l.b16 %v102
    %v327 = vunpack.c.l.b16 %v103
    %v328 = vunpack.c.l.b16 %v104
    %v329 = vunpack.c.l.b16 %v105
    %v330 = vunpack.c.l.b16 %v106
    %v331 = vunpack.c.l.b16 %v107
    %v332 = vunpack.c.l.b16 %v108
    %v333 = vunpack.c.l.b16 %v109
    %v334 = vunpack.c.l.b16 %v110
    %v335 = vunpack.c.l.b16 %v111
    %v336 = vunpack.c.l.b16 %v112
    %v337 = vunpack.c.l.b16 %v113
    %v338 = vunpack.c.l.b16 %v114
    %v339 = vunpack.c.l.b16 %v115
    %v340 = vunpack.c.l.b16 %v116
    %v341 = vunpack.c.l.b16 %v117
    %v342 = vunpack.c.l.b16 %v118
    %v343 = vunpack.c.l.b16 %v119
    %v344 = vunpack.c.l.b16 %v120
    %v345 = vunpack.c.l.b16 %v121
    %v346 = vunpack.c.l.b16 %v122
    %v347 = vunpack.c.l.b16 %v123
    %v348 = vunpack.c.l.b16 %v124
    %v349 = vunpack.c.l.b16 %v125
    %v350 = vunpack.c.l.b16 %v126
    %v351 = vunpack.c.l.b16 %v127
    %v352 = vunpack.c.l.b16 %v128
    %v353 = vunpack.c.l.b16 %v129
    %v354 = vunpack.c.l.b16 %v130
    %v355 = vunpack.c.l.b16 %v131
    %v356 = vunpack.c.l.b16 %v132
    %v357 = vunpack.c.l.b16 %v133
    %v358 = vunpack.c.l.b16 %v134
    %v359 = vunpack.c.l.b16 %v135
    %v360 = vunpack.c.l.b16 %v136
    %v361 = vunpack.c.l.b16 %v137
    %v362 = vunpack.c.l.b16 %v138
    %v363 = vunpack.c.l.b16 %v139
    %v364 = vunpack.c.l.b16 %v140
    %v365 = vunpack.c.l.b16 %v141
    %v366 = vunpack.c.l.b16 %v142
    %v367 = vunpack.c.l.b16 %v143
    %v368 = vunpack.c.l.b16 %v144
    %v369 = vunpack.c.l.b16 %v145
    %v370 = vunpack.c.l.b16 %v146
    %v371 = vunpack.c.l.b16 %v147
    %v372 = vunpack.c.l.b16 %v148
    %v373 = vunpack.c.l.b16 %v149
    %v374 = vunpack.c.l.b16 %v150
    %v375 = vunpack.c.l.b16 %v151
    %v376 = vunpack.c.l.b16 %v152
    %v377 = vunpack.c.l.b16 %v153
    %v378 = vunpack.c.l.b16 %v154
    %v379 = vunpack.c.l.b16 %v155
    %v380 = vunpack.c.l.b16 %v156
    %v381 = vunpack.c.l.b16 %v157
    %v382 = vunpack.c.l.b16 %v158
    %v383 = vunpack.c.l.b16 %v159
    %v384 = vunpack.c.l.b16 %v160
    %v385 = vunpack.c.l.b16 %v161
    %v386 = vunpack.c.l.b16 %v162
    %v387 = vunpack.c.l.b16 %v163
    %v388 = vunpack.c.l.b16 %v164
    %v389 = vunpack.c.l.b16 %v165
    %v390 = vunpack.c.l.b16 %v166
    %v391 = vunpack.c.l.b16 %v167
    %v392 = vunpack.c.l.b16 %v168
    %v393 = vunpack.c.l.b16 %v169
    %v394 = vunpack.c.l.b16 %v170
    %v395 = vunpack.c.l.b16 %v171
    %v396 = vunpack.c.l.b16 %v172
    %v397 = vunpack.c.l.b16 %v173
    %v398 = vunpack.c.l.b16 %v174
    %v399 = vunpack.c.l.b16 %v175
    %v400 = vunpack.c.l.b16 %v176
    %v401 = vunpack.c.l.b16 %v177
    %v402 = vunpack.c.l.b16 %v178
    %v403 = vunpack.c.l.b16 %v179
    %v404 = vunpack.c.l.b16 %v180
    %v405 = vunpack.c.l.b16 %v181
    %v406 = vunpack.c.l.b16 %v182
    %v407 = vunpack.c.l.b16 %v183
    %v408 = vunpack.c.l.b16 %v184
    %v409 = vunpack.c.l.b16 %v185
    %v410 = vunpack.c.l.b16 %v186
    %v411 = vunpack.c.l.b16 %v187
    %v412 = vunpack.c.l.b16 %v188
    %v413 = vunpack.c.l.b16 %v189
    %v414 = vunpack.c.l.b16 %v190
    %v415 = vpack.c.b16 %v318, %v317
    %v416 = vpack.c.b16 %v320, %v319
    %v417 = vpack.c.b16 %v322, %v321
    %v418 = vpack.c.b16 %v324, %v323
    %v419 = vpack.c.b16 %v326, %v325
    %v420 = vpack.c.b16 %v328, %v327
    %v421 = vpack.c.b16 %v330, %v329
    %v422 = vpack.c.b16 %v332, %v331
    %v423 = vpack.c.b16 %v334, %v333
    %v424 = vpack.c.b16 %v336, %v335
    %v425 = vpack.c.b16 %v338, %v337
    %v426 = vpack.c.b16 %v340, %v339
    %v427 = vpack.c.b16 %v342, %v341
    %v428 = vpack.c.b16 %v344, %v343
    %v429 = vpack.c.b16 %v346, %v345
    %v430 = vpack.c.b16 %v348, %v347
    %v431 = vpack.c.b16 %v350, %v349
    %v432 = vpack.c.b16 %v352, %v351
    %v433 = vpack.c.b16 %v354, %v353
    %v434 = vpack.c.b16 %v356, %v355
    %v435 = vpack.c.b16 %v358, %v357
    %v436 = vpack.c.b16 %v360, %v359
    %v437 = vpack.c.b16 %v362, %v361
    %v438 = vpack.c.b16 %v364, %v363
    %v439 = vpack.c.b16 %v366, %v365
    %v440 = vpack.c.b16 %v368, %v367
    %v441 = vpack.c.b16 %v370, %v369
    %v442 = vpack.c.b16 %v372, %v371
    %v443 = vpack.c.b16 %v374, %v373
    %v444 = vpack.c.b16 %v376, %v375
    %v445 = vpack.c.b16 %v378, %v377
    %v446 = vpack.c.b16 %v380, %v379
    %v447 = vpack.c.b16 %v382, %v381
    %v448 = vpack.c.b16 %v384, %v383
    %v449 = vpack.c.b16 %v386, %v385
    %v450 = vpack.c.b16 %v388, %v387
    %v451 = vpack.c.b16 %v390, %v389
    %v452 = vpack.c.b16 %v392, %v391
    %v453 = vpack.c.b16 %v394, %v393
    %v454 = vpack.c.b16 %v396, %v395
    %v455 = vpack.c.b16 %v398, %v397
    %v456 = vpack.c.b16 %v400, %v399
    %v457 = vpack.c.b16 %v402, %v401
    %v458 = vpack.c.b16 %v404, %v403
    %v459 = vpack.c.b16 %v406, %v405
    %v460 = vpack.c.b16 %v408, %v407
    %v461 = vpack.c.b16 %v410, %v409
    %v462 = vpack.c.b16 %v412, %v411
    %v463 = vpack.c.b16 %v414, %v413
    %vm513 = vcmask 130048
    %v515 = vsel %vm513, %v212, 0
    %517 = vmatpush.bf16.msra.mxu0 %v422
    %518 = vmatpush.bf16.msra.mxu0 %v421
    %519 = vmatpush.bf16.msra.mxu0 %v420
    %520 = vmatpush.bf16.msra.mxu0 %v419
    %521 = vmatpush.bf16.msra.mxu0 %v418
    %522 = vmatpush.bf16.msra.mxu0 %v417
    %523 = vmatpush.bf16.msra.mxu0 %v416
    %524 = vmatpush.bf16.msra.mxu0 %v415
    %525 = vmatmul.bf16.gmra.mxu0 %v206
    %v526 = vpop.f32.mrf.mxu0
    %v527 = vadd.f32 %v193, %v526
    %v528 = vpop.f32.mrf.mxu0
    %529 = vdwg.mxu0
    %530 = vmatpush.bf16.msra.mxu0 %v430
    %531 = vmatpush.bf16.msra.mxu0 %v429
    %532 = vmatpush.bf16.msra.mxu0 %v428
    %533 = vmatpush.bf16.msra.mxu0 %v427
    %534 = vmatpush.bf16.msra.mxu0 %v426
    %535 = vmatpush.bf16.msra.mxu0 %v425
    %536 = vmatpush.bf16.msra.mxu0 %v424
    %537 = vmatpush.bf16.msra.mxu0 %v423
    %538 = vmatmul.bf16.gmra.mxu0 %v207
    %v539 = vpop.f32.mrf.mxu0
    %v540 = vadd.f32 %v527, %v539
    %v541 = vpop.f32.mrf.mxu0
    %542 = vdwg.mxu0
    %543 = vmatpush.bf16.msra.mxu0 %v438
    %544 = vmatpush.bf16.msra.mxu0 %v437
    %545 = vmatpush.bf16.msra.mxu0 %v436
    %546 = vmatpush.bf16.msra.mxu0 %v435
    %547 = vmatpush.bf16.msra.mxu0 %v434
    %548 = vmatpush.bf16.msra.mxu0 %v433
    %549 = vmatpush.bf16.msra.mxu0 %v432
    %550 = vmatpush.bf16.msra.mxu0 %v431
    %551 = vmatmul.bf16.gmra.mxu0 %v208
    %v552 = vpop.f32.mrf.mxu0
    %v553 = vadd.f32 %v540, %v552
    %v554 = vpop.f32.mrf.mxu0
    %555 = vdwg.mxu0
    %556 = vmatpush.bf16.msra.mxu0 %v446
    %557 = vmatpush.bf16.msra.mxu0 %v445
    %558 = vmatpush.bf16.msra.mxu0 %v444
    %559 = vmatpush.bf16.msra.mxu0 %v443
    %560 = vmatpush.bf16.msra.mxu0 %v442
    %561 = vmatpush.bf16.msra.mxu0 %v441
    %562 = vmatpush.bf16.msra.mxu0 %v440
    %563 = vmatpush.bf16.msra.mxu0 %v439
    %564 = vmatmul.bf16.gmra.mxu0 %v209
    %v565 = vpop.f32.mrf.mxu0
    %v566 = vadd.f32 %v553, %v565
    %v567 = vpop.f32.mrf.mxu0
    %568 = vdwg.mxu0
    %569 = vmatpush.bf16.msra.mxu0 %v454
    %570 = vmatpush.bf16.msra.mxu0 %v453
    %571 = vmatpush.bf16.msra.mxu0 %v452
    %572 = vmatpush.bf16.msra.mxu0 %v451
    %573 = vmatpush.bf16.msra.mxu0 %v450
    %574 = vmatpush.bf16.msra.mxu0 %v449
    %575 = vmatpush.bf16.msra.mxu0 %v448
    %576 = vmatpush.bf16.msra.mxu0 %v447
    %577 = vmatmul.bf16.gmra.mxu0 %v210
    %v578 = vpop.f32.mrf.mxu0
    %v579 = vadd.f32 %v566, %v578
    %v580 = vpop.f32.mrf.mxu0
    %581 = vdwg.mxu0
    %582 = vmatpush.bf16.msra.mxu0 %v462
    %583 = vmatpush.bf16.msra.mxu0 %v461
    %584 = vmatpush.bf16.msra.mxu0 %v460
    %585 = vmatpush.bf16.msra.mxu0 %v459
    %586 = vmatpush.bf16.msra.mxu0 %v458
    %587 = vmatpush.bf16.msra.mxu0 %v457
    %588 = vmatpush.bf16.msra.mxu0 %v456
    %589 = vmatpush.bf16.msra.mxu0 %v455
    %590 = vmatmul.bf16.gmra.mxu0 %v211
    %v591 = vpop.f32.mrf.mxu0
    %v592 = vadd.f32 %v579, %v591
    %v593 = vpop.f32.mrf.mxu0
    %594 = vdwg.mxu0
    %595 = vmatpush.bf16.msra.mxu0 0
    %596 = vmatpush.bf16.msra.mxu0 0
    %597 = vmatpush.bf16.msra.mxu0 0
    %598 = vmatpush.bf16.msra.mxu0 0
    %599 = vmatpush.bf16.msra.mxu0 0
    %600 = vmatpush.bf16.msra.mxu0 0
    %601 = vmatpush.bf16.msra.mxu0 0
    %602 = vmatpush.bf16.msra.mxu0 %v463
    %603 = vmatmul.bf16.gmra.mxu0 %v515
    %v604 = vpop.f32.mrf.mxu0
    %v605 = vadd.f32 %v592, %v604
    %v606 = vpop.f32.mrf.mxu0
    %607 = vdwg.mxu0
    %v608 = vmax.f32 %v605, 0.0
    %v609 = vpack.c.bf16 %v608, %v608
    %v610 = vld [vmem:[#allocation7] sm:$0xf]
    %v611 = vld [vmem:[#allocation7 + $0x4] sm:$0xf]
    %v612 = vld [vmem:[#allocation7 + $0x8] sm:$0xf]
    %v613 = vld [vmem:[#allocation7 + $0xc] sm:$0xf]
    %v614 = vld [vmem:[#allocation7 + $0x10] sm:$0xf]
    %v615 = vld [vmem:[#allocation7 + $0x14] sm:$0xf]
    %v616 = vld [vmem:[#allocation7 + $0x18] sm:$0xf]
    %v617 = vld [vmem:[#allocation7 + $0x1c] sm:$0xf]
    %v618 = vld [vmem:[#allocation7 + $0x20] sm:$0xf]
    %v619 = vld [vmem:[#allocation7 + $0x24] sm:$0xf]
    %v620 = vld [vmem:[#allocation7 + $0x28] sm:$0xf]
    %v621 = vld [vmem:[#allocation7 + $0x2c] sm:$0xf]
    %v622 = vld [vmem:[#allocation7 + $0x30] sm:$0xf]
    %v623 = vld [vmem:[#allocation7 + $0x34] sm:$0xf]
    %v624 = vld [vmem:[#allocation7 + $0x38] sm:$0xf]
    %v625 = vld [vmem:[#allocation7 + $0x3c] sm:$0xf]
    %v626 = vld [vmem:[%s4] sm:$0x1]
    %v628 = vperm.slane %v626, 0
    %v646 = vunpack.c.l.b16 %v610
    %v647 = vunpack.c.l.b16 %v611
    %v648 = vunpack.c.l.b16 %v612
    %v649 = vunpack.c.l.b16 %v613
    %v650 = vunpack.c.l.b16 %v614
    %v651 = vunpack.c.l.b16 %v615
    %v652 = vunpack.c.l.b16 %v616
    %v653 = vunpack.c.l.b16 %v617
    %v654 = vunpack.c.l.b16 %v618
    %v655 = vunpack.c.l.b16 %v619
    %v656 = vunpack.c.l.b16 %v620
    %v657 = vunpack.c.l.b16 %v621
    %v658 = vunpack.c.l.b16 %v622
    %v659 = vunpack.c.l.b16 %v623
    %v660 = vunpack.c.l.b16 %v624
    %v661 = vunpack.c.l.b16 %v625
    %v662 = vpack.c.b16 %v647, %v646
    %v663 = vpack.c.b16 %v649, %v648
    %v664 = vpack.c.b16 %v651, %v650
    %v665 = vpack.c.b16 %v653, %v652
    %v666 = vpack.c.b16 %v655, %v654
    %v667 = vpack.c.b16 %v657, %v656
    %v668 = vpack.c.b16 %v659, %v658
    %v669 = vpack.c.b16 %v661, %v660
    %678 = vmatpush.bf16.msra.mxu0 %v669
    %679 = vmatpush.bf16.msra.mxu0 %v668
    %680 = vmatpush.bf16.msra.mxu0 %v667
    %681 = vmatpush.bf16.msra.mxu0 %v666
    %682 = vmatpush.bf16.msra.mxu0 %v665
    %683 = vmatpush.bf16.msra.mxu0 %v664
    %684 = vmatpush.bf16.msra.mxu0 %v663
    %685 = vmatpush.bf16.msra.mxu0 %v662
    %686 = vmatmul.bf16.gmra.mxu0 %v609
    %v687 = vpop.f32.mrf.mxu0
    %v688 = vadd.f32 %v628, %v687
    %v689 = vpop.f32.mrf.mxu0
    %690 = vdwg.mxu0
    %v691 = vmax.f32 %v688, 0.0
    %v692 = vpack.c.bf16 %v691, %v691
    %v693 = vld [vmem:[#allocation8] sm:$0xf]
    %v694 = vld [vmem:[#allocation8 + $0x4] sm:$0xf]
    %v695 = vld [vmem:[#allocation8 + $0x8] sm:$0xf]
    %v696 = vld [vmem:[#allocation8 + $0xc] sm:$0xf]
    %v697 = vld [vmem:[#allocation8 + $0x10] sm:$0xf]
    %v698 = vld [vmem:[#allocation8 + $0x14] sm:$0xf]
    %v699 = vld [vmem:[#allocation8 + $0x18] sm:$0xf]
    %v700 = vld [vmem:[#allocation8 + $0x1c] sm:$0xf]
    %v701 = vld [vmem:[#allocation8 + $0x20] sm:$0xf]
    %v702 = vld [vmem:[#allocation8 + $0x24] sm:$0xf]
    %v703 = vld [vmem:[#allocation8 + $0x28] sm:$0xf]
    %v704 = vld [vmem:[#allocation8 + $0x2c] sm:$0xf]
    %v705 = vld [vmem:[#allocation8 + $0x30] sm:$0xf]
    %v706 = vld [vmem:[#allocation8 + $0x34] sm:$0xf]
    %v707 = vld [vmem:[#allocation8 + $0x38] sm:$0xf]
    %v708 = vld [vmem:[#allocation8 + $0x3c] sm:$0xf]
    %v709 = vld [vmem:[%s6] sm:$0x1]
    %v711 = vperm.slane %v709, 0
    %v729 = vunpack.c.l.b16 %v693
    %v730 = vunpack.c.l.b16 %v694
    %v731 = vunpack.c.l.b16 %v695
    %v732 = vunpack.c.l.b16 %v696
    %v733 = vunpack.c.l.b16 %v697
    %v734 = vunpack.c.l.b16 %v698
    %v735 = vunpack.c.l.b16 %v699
    %v736 = vunpack.c.l.b16 %v700
    %v737 = vunpack.c.l.b16 %v701
    %v738 = vunpack.c.l.b16 %v702
    %v739 = vunpack.c.l.b16 %v703
    %v740 = vunpack.c.l.b16 %v704
    %v741 = vunpack.c.l.b16 %v705
    %v742 = vunpack.c.l.b16 %v706
    %v743 = vunpack.c.l.b16 %v707
    %v744 = vunpack.c.l.b16 %v708
    %v745 = vpack.c.b16 %v730, %v729
    %v746 = vpack.c.b16 %v732, %v731
    %v747 = vpack.c.b16 %v734, %v733
    %v748 = vpack.c.b16 %v736, %v735
    %v749 = vpack.c.b16 %v738, %v737
    %v750 = vpack.c.b16 %v740, %v739
    %v751 = vpack.c.b16 %v742, %v741
    %v752 = vpack.c.b16 %v744, %v743
    %761 = vmatpush.bf16.msra.mxu0 %v752
    %762 = vmatpush.bf16.msra.mxu0 %v751
    %763 = vmatpush.bf16.msra.mxu0 %v750
    %764 = vmatpush.bf16.msra.mxu0 %v749
    %765 = vmatpush.bf16.msra.mxu0 %v748
    %766 = vmatpush.bf16.msra.mxu0 %v747
    %767 = vmatpush.bf16.msra.mxu0 %v746
    %768 = vmatpush.bf16.msra.mxu0 %v745
    %769 = vmatmul.bf16.gmra.mxu0 %v692
    %v770 = vpop.f32.mrf.mxu0
    %v771 = vadd.f32 %v711, %v770
    %v772 = vpop.f32.mrf.mxu0
    %773 = vdwg.mxu0
    %774 = vst [vmem:[#allocation10] sm:$0xff] %v771
    // Predicated region
    $region46: #{tpu_custom_call.1} parent=1 // pred_check
      _
    $region47: #{tpu_custom_call.1} parent=1 // pred_check_branch
      %776 = sbr.rel (0) target = $region49
    $region48: #{tpu_custom_call.1} parent=1 // pred_region
      %778 = vsyncadd [#allocation4], 0
      %s780 = sshll.u32 [#allocation10], 4
      %s781 = int_to_ptr.vmem [resolvable:$true] %s780
      %s782 = sshll.u32 %s7, 4
      %s783 = int_to_ptr.hbm [resolvable:$true] %s782
      %785 = dma.vmem_to_hbm [thread:$0]  %s781, 128, %s783, [#allocation4]
    $region49: #{tpu_custom_call.1} parent=1 // pred_fallthru
      _
    // Predicated region
    $region50: #{tpu_custom_call.1} parent=1 // pred_check
      _
    $region51: #{tpu_custom_call.1} parent=1 // pred_check_branch
      %787 = sbr.rel (0) target = $region53
    $region52: #{tpu_custom_call.1} parent=1 // pred_region
      %789 = dma.done [#allocation4], 128
    $region53: #{tpu_custom_call.1} parent=1 // pred_fallthru
      _
    %790 = vsyncpa [#allocation3], 1
    %791 = vsyncpa [#allocation6], 1
    %792 = vsyncpa [#allocation9], 1
    %793 = vsyncpa [#allocation4], 1

</llo_original>
